<compile_context>
chip_gen: v6e
topology: v6e:2x2x1
jax: 0.10.0
libtpu: 0.0.40
codegen_flags: <defaults>
</compile_context>

<pallas_src>
import functools

import jax
import jax.numpy as jnp
from jax import lax
from jax.experimental import pallas as pl
from jax.experimental.pallas import tpu as pltpu


def _round_up(n, m):
    return ((n + m - 1) // m) * m


def _pad_gate_blocks(w, H, Hp):
    """Pad each of the 4 PyTorch gate blocks (i, f, g, o) along axis 0 from H to Hp."""
    if Hp == H:
        return w
    pad_tail = ((0, 0),) * (w.ndim - 1)
    parts = []
    for k in range(4):
        blk = w[k * H:(k + 1) * H]
        parts.append(jnp.pad(blk, ((0, Hp - H),) + pad_tail))
    return jnp.concatenate(parts, axis=0)


def lstm_kernel(x2d_ref, wih_ref, whh_ref, b_ref, wfc_ref, bfc_ref, out_ref,
                xw_scr, hT_scr, *, seq_len, batch):
    # x2d_ref: (T*B, I)    bf16 input sequence, flattened over (T, B)
    # wih_ref: (I, 4Hp)    bf16 W_ih^T  (gate order i, f, g, o — PyTorch convention)
    # whh_ref: (Hp, 4Hp)   bf16 W_hh^T
    # b_ref:   (1, 4Hp)    f32 bias_ih + bias_hh
    # wfc_ref: (Hp, O)     f32 fc weight^T
    # bfc_ref: (1, O)      f32 fc bias
    # out_ref: (T, O)      f32 sigmoid(fc(lstm_out[:, -1, :]))
    # xw_scr:  (T*B, 4Hp)  f32 VMEM scratch — precomputed input projection (+bias)
    # hT_scr:  (T, Hp)     f32 VMEM scratch — last-batch hidden state per step
    T = seq_len
    B = batch
    H = whh_ref.shape[0]                                  # padded hidden size Hp

    # ---- Prologue: input projection for all timesteps in ONE MXU matmul,
    # bias folded in once (no per-step broadcast / add). ----
    xw_scr[...] = (jnp.dot(x2d_ref[...], wih_ref[...],
                           preferred_element_type=jnp.float32)
                   + b_ref[...])

    whh = whh_ref[...]                                    # (Hp, 4Hp) bf16, loop-resident

    def step(t, carry):
        h, c = carry                                      # (B, Hp) f32 each
        # Only the recurrent matmul remains on the serial critical path.
        gates = (xw_scr[pl.ds(t * B, B), :]
                 + jnp.dot(h.astype(jnp.bfloat16), whh,
                           preferred_element_type=jnp.float32))   # (B, 4Hp) f32
        # One EUP sigmoid over the full 4Hp-lane slab, one tanh on the g slice.
        sig = jax.nn.sigmoid(gates)
        i_g = sig[:, 0 * H:1 * H]
        f_g = sig[:, 1 * H:2 * H]
        o_g = sig[:, 3 * H:4 * H]
        g_g = jnp.tanh(gates[:, 2 * H:3 * H])
        c_new = f_g * c + i_g * g_g
        h_new = o_g * jnp.tanh(c_new)
        # Stash last batch element's hidden state; fc head runs once in epilogue
        # (this is exactly what lstm_out[:, -1, :] selects in the PyTorch code).
        hT_scr[pl.ds(t, 1), :] = h_new[B - 1:B, :]
        return (h_new, c_new)

    h0 = jnp.zeros((B, H), jnp.float32)
    c0 = jnp.zeros((B, H), jnp.float32)
    # T is static and small — full unroll gives the scheduler cross-iteration
    # visibility (EUP / VPU / next-step MXU push interleave).
    lax.fori_loop(0, T, step, (h0, c0), unroll=True)

    # ---- Epilogue: ONE (T, Hp) @ (Hp, O) fc matmul + sigmoid, single dense store. ----
    out_ref[...] = jax.nn.sigmoid(
        jnp.dot(hT_scr[...], wfc_ref[...], preferred_element_type=jnp.float32)
        + bfc_ref[...])


def lstm_model_forward(x, params):
    """x: (T, B, I) f32.  Returns sigmoid(fc(lstm_out[:, -1, :])) of shape (T, O)."""
    w_ih, w_hh, b_ih, b_hh, w_fc, b_fc = params
    T, B, I = x.shape
    H = w_hh.shape[1]
    O = w_fc.shape[0]
    # Pad hidden size so the gate slab 4*Hp is a multiple of 128 lanes.
    # Zero-padded weight rows/cols keep padded h/c lanes exactly 0 (no contamination).
    Hp = _round_up(H, 32)

    # Parameter plumbing (plain JAX glue): per-gate zero-padding, matmul-friendly
    # layouts, bf16 MXU operands (f32 accumulation inside the kernel).
    wih_p = _pad_gate_blocks(w_ih, H, Hp)                               # (4Hp, I)
    whh_p = jnp.pad(_pad_gate_blocks(w_hh, H, Hp), ((0, 0), (0, Hp - H)))  # (4Hp, Hp)
    b_p = _pad_gate_blocks((b_ih + b_hh)[:, None], H, Hp)[:, 0]         # (4Hp,)
    wfc_p = jnp.pad(w_fc, ((0, 0), (0, Hp - H)))                        # (O, Hp)

    x2d = x.reshape(T * B, I).astype(jnp.bfloat16)                      # (T*B, I)
    wih_t = jnp.transpose(wih_p).astype(jnp.bfloat16)                   # (I, 4Hp)
    whh_t = jnp.transpose(whh_p).astype(jnp.bfloat16)                   # (Hp, 4Hp)
    b = b_p.reshape(1, 4 * Hp).astype(jnp.float32)                      # (1, 4Hp)
    wfc_t = jnp.transpose(wfc_p).astype(jnp.float32)                    # (Hp, O)
    bfc = b_fc.reshape(1, O).astype(jnp.float32)                        # (1, O)

    flops = (2 * T * B * I * 4 * Hp          # input projection (prologue)
             + 2 * T * B * Hp * 4 * Hp       # recurrent matmuls
             + 2 * T * Hp * O)               # fc head (epilogue)
    transcendentals = T * B * (4 * Hp + Hp) + T * O
    bytes_accessed = (x2d.size * 2 + wih_t.size * 2 + whh_t.size * 2
                      + b.size * 4 + wfc_t.size * 4 + bfc.size * 4 + T * O * 4)

    vmem = pl.BlockSpec(memory_space=pltpu.MemorySpace.VMEM)
    kernel = functools.partial(lstm_kernel, seq_len=T, batch=B)
    return pl.pallas_call(
        kernel,
        out_shape=jax.ShapeDtypeStruct((T, O), jnp.float32),
        in_specs=[vmem] * 6,
        out_specs=vmem,
        scratch_shapes=[
            pltpu.VMEM((T * B, 4 * Hp), jnp.float32),    # precomputed x@Wih + b
            pltpu.VMEM((T, Hp), jnp.float32),            # per-step h[B-1]
        ],
        cost_estimate=pl.CostEstimate(flops=flops,
                                      transcendentals=transcendentals,
                                      bytes_accessed=bytes_accessed),
    )(x2d, wih_t, whh_t, b, wfc_t, bfc)


def init_params(key, input_size, hidden_size, output_size):
    """Deterministic init matching PyTorch shapes (uniform +-1/sqrt(H))."""
    k = 1.0 / jnp.sqrt(jnp.float32(hidden_size))
    ks = jax.random.split(key, 6)
    w_ih = jax.random.uniform(ks[0], (4 * hidden_size, input_size), jnp.float32, -k, k)
    w_hh = jax.random.uniform(ks[1], (4 * hidden_size, hidden_size), jnp.float32, -k, k)
    b_ih = jax.random.uniform(ks[2], (4 * hidden_size,), jnp.float32, -k, k)
    b_hh = jax.random.uniform(ks[3], (4 * hidden_size,), jnp.float32, -k, k)
    w_fc = jax.random.uniform(ks[4], (output_size, hidden_size), jnp.float32, -k, k)
    b_fc = jax.random.uniform(ks[5], (output_size,), jnp.float32, -k, k)
    return (w_ih, w_hh, b_ih, b_hh, w_fc, b_fc)


def reference_forward(x, params):
    """Pure-JAX f32 reference of the PyTorch forward (for correctness check)."""
    w_ih, w_hh, b_ih, b_hh, w_fc, b_fc = params
    T, B, I = x.shape
    H = w_hh.shape[1]
    h = jnp.zeros((B, H), jnp.float32)
    c = jnp.zeros((B, H), jnp.float32)
    hs = []
    for t in range(T):
        gates = x[t] @ w_ih.T + b_ih + h @ w_hh.T + b_hh
        i = jax.nn.sigmoid(gates[:, :H])
        f = jax.nn.sigmoid(gates[:, H:2 * H])
        g = jnp.tanh(gates[:, 2 * H:3 * H])
        o = jax.nn.sigmoid(gates[:, 3 * H:])
        c = f * c + i * g
        h = o * jnp.tanh(c)
        hs.append(h)
    lstm_out = jnp.stack(hs)                 # (T, B, H)
    last = lstm_out[:, -1, :]                # (T, H) — last batch element, as in PyTorch code
    return jax.nn.sigmoid(last @ w_fc.T + b_fc)


if __name__ == "__main__":
    # Module's real hyperparameters: input_size=4, hidden_size=50, output_size=1.
    # Small sequence/batch: seq=8, batch=2. H=50 is padded to 64 inside the wrapper.
    T, B, I, H, O = 8, 2, 4, 50, 1

    key = jax.random.PRNGKey(0)
    kx, kp = jax.random.split(key)
    x = jax.random.normal(kx, (T, B, I), jnp.float32)
    params = init_params(kp, I, H, O)

    out = lstm_model_forward(x, params)
    out = jax.block_until_ready(out)

    ref = reference_forward(x, params)
    assert out.shape == (T, O), out.shape
    # bf16 MXU operands -> small drift vs f32 reference; tolerance loosened accordingly.
    assert jnp.allclose(out, ref, atol=2e-2, rtol=2e-2), (out, ref)

    print("KERNEL_OK")
</pallas_src>

<mosaic_0001>
module attributes {stable_mosaic.version = 11 : i64} {
  func.func @lstm_kernel(%arg0: memref<16x4xbf16, #tpu.memory_space<vmem>>, %arg1: memref<4x256xbf16, #tpu.memory_space<vmem>>, %arg2: memref<64x256xbf16, #tpu.memory_space<vmem>>, %arg3: memref<1x256xf32, #tpu.memory_space<vmem>>, %arg4: memref<64x1xf32, #tpu.memory_space<vmem>>, %arg5: memref<1x1xf32, #tpu.memory_space<vmem>>, %arg6: memref<8x1xf32, #tpu.memory_space<vmem>>, %arg7: memref<16x256xf32, #tpu.memory_space<vmem>>, %arg8: memref<8x64xf32, #tpu.memory_space<vmem>>) attributes {dimension_semantics = [], scalar_prefetch = 0 : i64, scratch_operands = 2 : i64, tpu.core_type = #tpu.core_type<tc>} {
    %c0 = arith.constant 0 : index
    %c0_0 = arith.constant 0 : index
    %0 = vector.load %arg0[%c0, %c0_0] : memref<16x4xbf16, #tpu.memory_space<vmem>>, vector<16x4xbf16>
    %c0_1 = arith.constant 0 : index
    %c0_2 = arith.constant 0 : index
    %1 = vector.load %arg1[%c0_1, %c0_2] : memref<4x256xbf16, #tpu.memory_space<vmem>>, vector<4x256xbf16>
    %cst = arith.constant dense<0.000000e+00> : vector<16x256xf32>
    %2 = tpu.matmul %0, %1, %cst {dimension_numbers = #tpu.dot_dimension_numbers<[1], [0], [0], [1], [0, 0, 1, 1], [], []>} : vector<16x4xbf16>, vector<4x256xbf16>, vector<16x256xf32> -> vector<16x256xf32>
    %c0_3 = arith.constant 0 : index
    %c0_4 = arith.constant 0 : index
    %3 = vector.load %arg3[%c0_3, %c0_4] : memref<1x256xf32, #tpu.memory_space<vmem>>, vector<1x256xf32>
    %4 = vector.broadcast %3 : vector<1x256xf32> to vector<16x256xf32>
    %5 = arith.addf %2, %4 : vector<16x256xf32>
    %c0_5 = arith.constant 0 : index
    %c0_6 = arith.constant 0 : index
    %6 = vector.load %arg7[%c0_5, %c0_6] : memref<16x256xf32, #tpu.memory_space<vmem>>, vector<16x256xf32>
    tpu.vector_store %arg7[%c0_5, %c0_6], %5 {strides = array<i32>} : memref<16x256xf32, #tpu.memory_space<vmem>>, vector<16x256xf32>,
    %c0_7 = arith.constant 0 : index
    %c0_8 = arith.constant 0 : index
    %7 = vector.load %arg2[%c0_7, %c0_8] : memref<64x256xbf16, #tpu.memory_space<vmem>>, vector<64x256xbf16>
    %cst_9 = arith.constant 0.000000e+00 : f32
    %8 = vector.broadcast %cst_9 : f32 to vector<2x64xf32>
    %cst_10 = arith.constant 0.000000e+00 : f32
    %9 = vector.broadcast %cst_10 : f32 to vector<2x64xf32>
    %c0_i32 = arith.constant 0 : i32
    %c2_i32 = arith.constant 2 : i32
    %10 = arith.muli %c0_i32, %c2_i32 : i32
    %11 = arith.index_cast %10 : i32 to index
    %c0_11 = arith.constant 0 : index
    %12 = vector.load %arg7[%11, %c0_11] : memref<16x256xf32, #tpu.memory_space<vmem>>, vector<2x256xf32>
    %13 = arith.truncf %8 : vector<2x64xf32> to vector<2x64xbf16>
    %cst_12 = arith.constant dense<0.000000e+00> : vector<2x256xf32>
    %14 = tpu.matmul %13, %7, %cst_12 {dimension_numbers = #tpu.dot_dimension_numbers<[1], [0], [0], [1], [0, 0, 1, 1], [], []>} : vector<2x64xbf16>, vector<64x256xbf16>, vector<2x256xf32> -> vector<2x256xf32>
    %15 = arith.addf %12, %14 : vector<2x256xf32>
    %16 = arith.negf %15 : vector<2x256xf32>
    %17 = math.exp %16 : vector<2x256xf32>
    %cst_13 = arith.constant 1.000000e+00 : f32
    %18 = vector.broadcast %cst_13 : f32 to vector<2x256xf32>
    %19 = arith.addf %18, %17 : vector<2x256xf32>
    %20 = arith.divf %18, %19 : vector<2x256xf32>
    %21 = vector.extract_strided_slice %20 {offsets = [0, 0], sizes = [2, 64], strides = [1, 1]} : vector<2x256xf32> to vector<2x64xf32>
    %22 = vector.extract_strided_slice %20 {offsets = [0, 64], sizes = [2, 64], strides = [1, 1]} : vector<2x256xf32> to vector<2x64xf32>
    %23 = vector.extract_strided_slice %20 {offsets = [0, 192], sizes = [2, 64], strides = [1, 1]} : vector<2x256xf32> to vector<2x64xf32>
    %24 = vector.extract_strided_slice %15 {offsets = [0, 128], sizes = [2, 64], strides = [1, 1]} : vector<2x256xf32> to vector<2x64xf32>
    %25 = math.tanh %24 : vector<2x64xf32>
    %26 = arith.mulf %22, %9 : vector<2x64xf32>
    %27 = arith.mulf %21, %25 : vector<2x64xf32>
    %28 = arith.addf %26, %27 : vector<2x64xf32>
    %29 = math.tanh %28 : vector<2x64xf32>
    %30 = arith.mulf %23, %29 : vector<2x64xf32>
    %31 = vector.extract_strided_slice %30 {offsets = [1, 0], sizes = [1, 64], strides = [1, 1]} : vector<2x64xf32> to vector<1x64xf32>
    %32 = arith.index_cast %c0_i32 : i32 to index
    %c0_14 = arith.constant 0 : index
    %33 = vector.load %arg8[%32, %c0_14] : memref<8x64xf32, #tpu.memory_space<vmem>>, vector<1x64xf32>
    tpu.vector_store %arg8[%32, %c0_14], %31 {strides = array<i32>} : memref<8x64xf32, #tpu.memory_space<vmem>>, vector<1x64xf32>,
    %c1_i32 = arith.constant 1 : i32
    %c2_i32_15 = arith.constant 2 : i32
    %34 = arith.muli %c1_i32, %c2_i32_15 : i32
    %35 = arith.index_cast %34 : i32 to index
    %c0_16 = arith.constant 0 : index
    %36 = vector.load %arg7[%35, %c0_16] : memref<16x256xf32, #tpu.memory_space<vmem>>, vector<2x256xf32>
    %37 = arith.truncf %30 : vector<2x64xf32> to vector<2x64xbf16>
    %cst_17 = arith.constant dense<0.000000e+00> : vector<2x256xf32>
    %38 = tpu.matmul %37, %7, %cst_17 {dimension_numbers = #tpu.dot_dimension_numbers<[1], [0], [0], [1], [0, 0, 1, 1], [], []>} : vector<2x64xbf16>, vector<64x256xbf16>, vector<2x256xf32> -> vector<2x256xf32>
    %39 = arith.addf %36, %38 : vector<2x256xf32>
    %40 = arith.negf %39 : vector<2x256xf32>
    %41 = math.exp %40 : vector<2x256xf32>
    %cst_18 = arith.constant 1.000000e+00 : f32
    %42 = vector.broadcast %cst_18 : f32 to vector<2x256xf32>
    %43 = arith.addf %42, %41 : vector<2x256xf32>
    %44 = arith.divf %42, %43 : vector<2x256xf32>
    %45 = vector.extract_strided_slice %44 {offsets = [0, 0], sizes = [2, 64], strides = [1, 1]} : vector<2x256xf32> to vector<2x64xf32>
    %46 = vector.extract_strided_slice %44 {offsets = [0, 64], sizes = [2, 64], strides = [1, 1]} : vector<2x256xf32> to vector<2x64xf32>
    %47 = vector.extract_strided_slice %44 {offsets = [0, 192], sizes = [2, 64], strides = [1, 1]} : vector<2x256xf32> to vector<2x64xf32>
    %48 = vector.extract_strided_slice %39 {offsets = [0, 128], sizes = [2, 64], strides = [1, 1]} : vector<2x256xf32> to vector<2x64xf32>
    %49 = math.tanh %48 : vector<2x64xf32>
    %50 = arith.mulf %46, %28 : vector<2x64xf32>
    %51 = arith.mulf %45, %49 : vector<2x64xf32>
    %52 = arith.addf %50, %51 : vector<2x64xf32>
    %53 = math.tanh %52 : vector<2x64xf32>
    %54 = arith.mulf %47, %53 : vector<2x64xf32>
    %55 = vector.extract_strided_slice %54 {offsets = [1, 0], sizes = [1, 64], strides = [1, 1]} : vector<2x64xf32> to vector<1x64xf32>
    %56 = arith.index_cast %c1_i32 : i32 to index
    %c0_19 = arith.constant 0 : index
    %57 = vector.load %arg8[%56, %c0_19] : memref<8x64xf32, #tpu.memory_space<vmem>>, vector<1x64xf32>
    tpu.vector_store %arg8[%56, %c0_19], %55 {strides = array<i32>} : memref<8x64xf32, #tpu.memory_space<vmem>>, vector<1x64xf32>,
    %c2_i32_20 = arith.constant 2 : i32
    %c2_i32_21 = arith.constant 2 : i32
    %58 = arith.muli %c2_i32_20, %c2_i32_21 : i32
    %59 = arith.index_cast %58 : i32 to index
    %c0_22 = arith.constant 0 : index
    %60 = vector.load %arg7[%59, %c0_22] : memref<16x256xf32, #tpu.memory_space<vmem>>, vector<2x256xf32>
    %61 = arith.truncf %54 : vector<2x64xf32> to vector<2x64xbf16>
    %cst_23 = arith.constant dense<0.000000e+00> : vector<2x256xf32>
    %62 = tpu.matmul %61, %7, %cst_23 {dimension_numbers = #tpu.dot_dimension_numbers<[1], [0], [0], [1], [0, 0, 1, 1], [], []>} : vector<2x64xbf16>, vector<64x256xbf16>, vector<2x256xf32> -> vector<2x256xf32>
    %63 = arith.addf %60, %62 : vector<2x256xf32>
    %64 = arith.negf %63 : vector<2x256xf32>
    %65 = math.exp %64 : vector<2x256xf32>
    %cst_24 = arith.constant 1.000000e+00 : f32
    %66 = vector.broadcast %cst_24 : f32 to vector<2x256xf32>
    %67 = arith.addf %66, %65 : vector<2x256xf32>
    %68 = arith.divf %66, %67 : vector<2x256xf32>
    %69 = vector.extract_strided_slice %68 {offsets = [0, 0], sizes = [2, 64], strides = [1, 1]} : vector<2x256xf32> to vector<2x64xf32>
    %70 = vector.extract_strided_slice %68 {offsets = [0, 64], sizes = [2, 64], strides = [1, 1]} : vector<2x256xf32> to vector<2x64xf32>
    %71 = vector.extract_strided_slice %68 {offsets = [0, 192], sizes = [2, 64], strides = [1, 1]} : vector<2x256xf32> to vector<2x64xf32>
    %72 = vector.extract_strided_slice %63 {offsets = [0, 128], sizes = [2, 64], strides = [1, 1]} : vector<2x256xf32> to vector<2x64xf32>
    %73 = math.tanh %72 : vector<2x64xf32>
    %74 = arith.mulf %70, %52 : vector<2x64xf32>
    %75 = arith.mulf %69, %73 : vector<2x64xf32>
    %76 = arith.addf %74, %75 : vector<2x64xf32>
    %77 = math.tanh %76 : vector<2x64xf32>
    %78 = arith.mulf %71, %77 : vector<2x64xf32>
    %79 = vector.extract_strided_slice %78 {offsets = [1, 0], sizes = [1, 64], strides = [1, 1]} : vector<2x64xf32> to vector<1x64xf32>
    %80 = arith.index_cast %c2_i32_20 : i32 to index
    %c0_25 = arith.constant 0 : index
    %81 = vector.load %arg8[%80, %c0_25] : memref<8x64xf32, #tpu.memory_space<vmem>>, vector<1x64xf32>
    tpu.vector_store %arg8[%80, %c0_25], %79 {strides = array<i32>} : memref<8x64xf32, #tpu.memory_space<vmem>>, vector<1x64xf32>,
    %c3_i32 = arith.constant 3 : i32
    %c2_i32_26 = arith.constant 2 : i32
    %82 = arith.muli %c3_i32, %c2_i32_26 : i32
    %83 = arith.index_cast %82 : i32 to index
    %c0_27 = arith.constant 0 : index
    %84 = vector.load %arg7[%83, %c0_27] : memref<16x256xf32, #tpu.memory_space<vmem>>, vector<2x256xf32>
    %85 = arith.truncf %78 : vector<2x64xf32> to vector<2x64xbf16>
    %cst_28 = arith.constant dense<0.000000e+00> : vector<2x256xf32>
    %86 = tpu.matmul %85, %7, %cst_28 {dimension_numbers = #tpu.dot_dimension_numbers<[1], [0], [0], [1], [0, 0, 1, 1], [], []>} : vector<2x64xbf16>, vector<64x256xbf16>, vector<2x256xf32> -> vector<2x256xf32>
    %87 = arith.addf %84, %86 : vector<2x256xf32>
    %88 = arith.negf %87 : vector<2x256xf32>
    %89 = math.exp %88 : vector<2x256xf32>
    %cst_29 = arith.constant 1.000000e+00 : f32
    %90 = vector.broadcast %cst_29 : f32 to vector<2x256xf32>
    %91 = arith.addf %90, %89 : vector<2x256xf32>
    %92 = arith.divf %90, %91 : vector<2x256xf32>
    %93 = vector.extract_strided_slice %92 {offsets = [0, 0], sizes = [2, 64], strides = [1, 1]} : vector<2x256xf32> to vector<2x64xf32>
    %94 = vector.extract_strided_slice %92 {offsets = [0, 64], sizes = [2, 64], strides = [1, 1]} : vector<2x256xf32> to vector<2x64xf32>
    %95 = vector.extract_strided_slice %92 {offsets = [0, 192], sizes = [2, 64], strides = [1, 1]} : vector<2x256xf32> to vector<2x64xf32>
    %96 = vector.extract_strided_slice %87 {offsets = [0, 128], sizes = [2, 64], strides = [1, 1]} : vector<2x256xf32> to vector<2x64xf32>
    %97 = math.tanh %96 : vector<2x64xf32>
    %98 = arith.mulf %94, %76 : vector<2x64xf32>
    %99 = arith.mulf %93, %97 : vector<2x64xf32>
    %100 = arith.addf %98, %99 : vector<2x64xf32>
    %101 = math.tanh %100 : vector<2x64xf32>
    %102 = arith.mulf %95, %101 : vector<2x64xf32>
    %103 = vector.extract_strided_slice %102 {offsets = [1, 0], sizes = [1, 64], strides = [1, 1]} : vector<2x64xf32> to vector<1x64xf32>
    %104 = arith.index_cast %c3_i32 : i32 to index
    %c0_30 = arith.constant 0 : index
    %105 = vector.load %arg8[%104, %c0_30] : memref<8x64xf32, #tpu.memory_space<vmem>>, vector<1x64xf32>
    tpu.vector_store %arg8[%104, %c0_30], %103 {strides = array<i32>} : memref<8x64xf32, #tpu.memory_space<vmem>>, vector<1x64xf32>,
    %c4_i32 = arith.constant 4 : i32
    %c2_i32_31 = arith.constant 2 : i32
    %106 = arith.muli %c4_i32, %c2_i32_31 : i32
    %107 = arith.index_cast %106 : i32 to index
    %c0_32 = arith.constant 0 : index
    %108 = vector.load %arg7[%107, %c0_32] : memref<16x256xf32, #tpu.memory_space<vmem>>, vector<2x256xf32>
    %109 = arith.truncf %102 : vector<2x64xf32> to vector<2x64xbf16>
    %cst_33 = arith.constant dense<0.000000e+00> : vector<2x256xf32>
    %110 = tpu.matmul %109, %7, %cst_33 {dimension_numbers = #tpu.dot_dimension_numbers<[1], [0], [0], [1], [0, 0, 1, 1], [], []>} : vector<2x64xbf16>, vector<64x256xbf16>, vector<2x256xf32> -> vector<2x256xf32>
    %111 = arith.addf %108, %110 : vector<2x256xf32>
    %112 = arith.negf %111 : vector<2x256xf32>
    %113 = math.exp %112 : vector<2x256xf32>
    %cst_34 = arith.constant 1.000000e+00 : f32
    %114 = vector.broadcast %cst_34 : f32 to vector<2x256xf32>
    %115 = arith.addf %114, %113 : vector<2x256xf32>
    %116 = arith.divf %114, %115 : vector<2x256xf32>
    %117 = vector.extract_strided_slice %116 {offsets = [0, 0], sizes = [2, 64], strides = [1, 1]} : vector<2x256xf32> to vector<2x64xf32>
    %118 = vector.extract_strided_slice %116 {offsets = [0, 64], sizes = [2, 64], strides = [1, 1]} : vector<2x256xf32> to vector<2x64xf32>
    %119 = vector.extract_strided_slice %116 {offsets = [0, 192], sizes = [2, 64], strides = [1, 1]} : vector<2x256xf32> to vector<2x64xf32>
    %120 = vector.extract_strided_slice %111 {offsets = [0, 128], sizes = [2, 64], strides = [1, 1]} : vector<2x256xf32> to vector<2x64xf32>
    %121 = math.tanh %120 : vector<2x64xf32>
    %122 = arith.mulf %118, %100 : vector<2x64xf32>
    %123 = arith.mulf %117, %121 : vector<2x64xf32>
    %124 = arith.addf %122, %123 : vector<2x64xf32>
    %125 = math.tanh %124 : vector<2x64xf32>
    %126 = arith.mulf %119, %125 : vector<2x64xf32>
    %127 = vector.extract_strided_slice %126 {offsets = [1, 0], sizes = [1, 64], strides = [1, 1]} : vector<2x64xf32> to vector<1x64xf32>
    %128 = arith.index_cast %c4_i32 : i32 to index
    %c0_35 = arith.constant 0 : index
    %129 = vector.load %arg8[%128, %c0_35] : memref<8x64xf32, #tpu.memory_space<vmem>>, vector<1x64xf32>
    tpu.vector_store %arg8[%128, %c0_35], %127 {strides = array<i32>} : memref<8x64xf32, #tpu.memory_space<vmem>>, vector<1x64xf32>,
    %c5_i32 = arith.constant 5 : i32
    %c2_i32_36 = arith.constant 2 : i32
    %130 = arith.muli %c5_i32, %c2_i32_36 : i32
    %131 = arith.index_cast %130 : i32 to index
    %c0_37 = arith.constant 0 : index
    %132 = vector.load %arg7[%131, %c0_37] : memref<16x256xf32, #tpu.memory_space<vmem>>, vector<2x256xf32>
    %133 = arith.truncf %126 : vector<2x64xf32> to vector<2x64xbf16>
    %cst_38 = arith.constant dense<0.000000e+00> : vector<2x256xf32>
    %134 = tpu.matmul %133, %7, %cst_38 {dimension_numbers = #tpu.dot_dimension_numbers<[1], [0], [0], [1], [0, 0, 1, 1], [], []>} : vector<2x64xbf16>, vector<64x256xbf16>, vector<2x256xf32> -> vector<2x256xf32>
    %135 = arith.addf %132, %134 : vector<2x256xf32>
    %136 = arith.negf %135 : vector<2x256xf32>
    %137 = math.exp %136 : vector<2x256xf32>
    %cst_39 = arith.constant 1.000000e+00 : f32
    %138 = vector.broadcast %cst_39 : f32 to vector<2x256xf32>
    %139 = arith.addf %138, %137 : vector<2x256xf32>
    %140 = arith.divf %138, %139 : vector<2x256xf32>
    %141 = vector.extract_strided_slice %140 {offsets = [0, 0], sizes = [2, 64], strides = [1, 1]} : vector<2x256xf32> to vector<2x64xf32>
    %142 = vector.extract_strided_slice %140 {offsets = [0, 64], sizes = [2, 64], strides = [1, 1]} : vector<2x256xf32> to vector<2x64xf32>
    %143 = vector.extract_strided_slice %140 {offsets = [0, 192], sizes = [2, 64], strides = [1, 1]} : vector<2x256xf32> to vector<2x64xf32>
    %144 = vector.extract_strided_slice %135 {offsets = [0, 128], sizes = [2, 64], strides = [1, 1]} : vector<2x256xf32> to vector<2x64xf32>
    %145 = math.tanh %144 : vector<2x64xf32>
    %146 = arith.mulf %142, %124 : vector<2x64xf32>
    %147 = arith.mulf %141, %145 : vector<2x64xf32>
    %148 = arith.addf %146, %147 : vector<2x64xf32>
    %149 = math.tanh %148 : vector<2x64xf32>
    %150 = arith.mulf %143, %149 : vector<2x64xf32>
    %151 = vector.extract_strided_slice %150 {offsets = [1, 0], sizes = [1, 64], strides = [1, 1]} : vector<2x64xf32> to vector<1x64xf32>
    %152 = arith.index_cast %c5_i32 : i32 to index
    %c0_40 = arith.constant 0 : index
    %153 = vector.load %arg8[%152, %c0_40] : memref<8x64xf32, #tpu.memory_space<vmem>>, vector<1x64xf32>
    tpu.vector_store %arg8[%152, %c0_40], %151 {strides = array<i32>} : memref<8x64xf32, #tpu.memory_space<vmem>>, vector<1x64xf32>,
    %c6_i32 = arith.constant 6 : i32
    %c2_i32_41 = arith.constant 2 : i32
    %154 = arith.muli %c6_i32, %c2_i32_41 : i32
    %155 = arith.index_cast %154 : i32 to index
    %c0_42 = arith.constant 0 : index
    %156 = vector.load %arg7[%155, %c0_42] : memref<16x256xf32, #tpu.memory_space<vmem>>, vector<2x256xf32>
    %157 = arith.truncf %150 : vector<2x64xf32> to vector<2x64xbf16>
    %cst_43 = arith.constant dense<0.000000e+00> : vector<2x256xf32>
    %158 = tpu.matmul %157, %7, %cst_43 {dimension_numbers = #tpu.dot_dimension_numbers<[1], [0], [0], [1], [0, 0, 1, 1], [], []>} : vector<2x64xbf16>, vector<64x256xbf16>, vector<2x256xf32> -> vector<2x256xf32>
    %159 = arith.addf %156, %158 : vector<2x256xf32>
    %160 = arith.negf %159 : vector<2x256xf32>
    %161 = math.exp %160 : vector<2x256xf32>
    %cst_44 = arith.constant 1.000000e+00 : f32
    %162 = vector.broadcast %cst_44 : f32 to vector<2x256xf32>
    %163 = arith.addf %162, %161 : vector<2x256xf32>
    %164 = arith.divf %162, %163 : vector<2x256xf32>
    %165 = vector.extract_strided_slice %164 {offsets = [0, 0], sizes = [2, 64], strides = [1, 1]} : vector<2x256xf32> to vector<2x64xf32>
    %166 = vector.extract_strided_slice %164 {offsets = [0, 64], sizes = [2, 64], strides = [1, 1]} : vector<2x256xf32> to vector<2x64xf32>
    %167 = vector.extract_strided_slice %164 {offsets = [0, 192], sizes = [2, 64], strides = [1, 1]} : vector<2x256xf32> to vector<2x64xf32>
    %168 = vector.extract_strided_slice %159 {offsets = [0, 128], sizes = [2, 64], strides = [1, 1]} : vector<2x256xf32> to vector<2x64xf32>
    %169 = math.tanh %168 : vector<2x64xf32>
    %170 = arith.mulf %166, %148 : vector<2x64xf32>
    %171 = arith.mulf %165, %169 : vector<2x64xf32>
    %172 = arith.addf %170, %171 : vector<2x64xf32>
    %173 = math.tanh %172 : vector<2x64xf32>
    %174 = arith.mulf %167, %173 : vector<2x64xf32>
    %175 = vector.extract_strided_slice %174 {offsets = [1, 0], sizes = [1, 64], strides = [1, 1]} : vector<2x64xf32> to vector<1x64xf32>
    %176 = arith.index_cast %c6_i32 : i32 to index
    %c0_45 = arith.constant 0 : index
    %177 = vector.load %arg8[%176, %c0_45] : memref<8x64xf32, #tpu.memory_space<vmem>>, vector<1x64xf32>
    tpu.vector_store %arg8[%176, %c0_45], %175 {strides = array<i32>} : memref<8x64xf32, #tpu.memory_space<vmem>>, vector<1x64xf32>,
    %c7_i32 = arith.constant 7 : i32
    %c2_i32_46 = arith.constant 2 : i32
    %178 = arith.muli %c7_i32, %c2_i32_46 : i32
    %179 = arith.index_cast %178 : i32 to index
    %c0_47 = arith.constant 0 : index
    %180 = vector.load %arg7[%179, %c0_47] : memref<16x256xf32, #tpu.memory_space<vmem>>, vector<2x256xf32>
    %181 = arith.truncf %174 : vector<2x64xf32> to vector<2x64xbf16>
    %cst_48 = arith.constant dense<0.000000e+00> : vector<2x256xf32>
    %182 = tpu.matmul %181, %7, %cst_48 {dimension_numbers = #tpu.dot_dimension_numbers<[1], [0], [0], [1], [0, 0, 1, 1], [], []>} : vector<2x64xbf16>, vector<64x256xbf16>, vector<2x256xf32> -> vector<2x256xf32>
    %183 = arith.addf %180, %182 : vector<2x256xf32>
    %184 = arith.negf %183 : vector<2x256xf32>
    %185 = math.exp %184 : vector<2x256xf32>
    %cst_49 = arith.constant 1.000000e+00 : f32
    %186 = vector.broadcast %cst_49 : f32 to vector<2x256xf32>
    %187 = arith.addf %186, %185 : vector<2x256xf32>
    %188 = arith.divf %186, %187 : vector<2x256xf32>
    %189 = vector.extract_strided_slice %188 {offsets = [0, 0], sizes = [2, 64], strides = [1, 1]} : vector<2x256xf32> to vector<2x64xf32>
    %190 = vector.extract_strided_slice %188 {offsets = [0, 64], sizes = [2, 64], strides = [1, 1]} : vector<2x256xf32> to vector<2x64xf32>
    %191 = vector.extract_strided_slice %188 {offsets = [0, 192], sizes = [2, 64], strides = [1, 1]} : vector<2x256xf32> to vector<2x64xf32>
    %192 = vector.extract_strided_slice %183 {offsets = [0, 128], sizes = [2, 64], strides = [1, 1]} : vector<2x256xf32> to vector<2x64xf32>
    %193 = math.tanh %192 : vector<2x64xf32>
    %194 = arith.mulf %190, %172 : vector<2x64xf32>
    %195 = arith.mulf %189, %193 : vector<2x64xf32>
    %196 = arith.addf %194, %195 : vector<2x64xf32>
    %197 = math.tanh %196 : vector<2x64xf32>
    %198 = arith.mulf %191, %197 : vector<2x64xf32>
    %199 = vector.extract_strided_slice %198 {offsets = [1, 0], sizes = [1, 64], strides = [1, 1]} : vector<2x64xf32> to vector<1x64xf32>
    %200 = arith.index_cast %c7_i32 : i32 to index
    %c0_50 = arith.constant 0 : index
    %201 = vector.load %arg8[%200, %c0_50] : memref<8x64xf32, #tpu.memory_space<vmem>>, vector<1x64xf32>
    tpu.vector_store %arg8[%200, %c0_50], %199 {strides = array<i32>} : memref<8x64xf32, #tpu.memory_space<vmem>>, vector<1x64xf32>,
    %c8_i32 = arith.constant 8 : i32
    %c0_51 = arith.constant 0 : index
    %c0_52 = arith.constant 0 : index
    %202 = vector.load %arg8[%c0_51, %c0_52] : memref<8x64xf32, #tpu.memory_space<vmem>>, vector<8x64xf32>
    %c0_53 = arith.constant 0 : index
    %c0_54 = arith.constant 0 : index
    %203 = vector.load %arg4[%c0_53, %c0_54] : memref<64x1xf32, #tpu.memory_space<vmem>>, vector<64x1xf32>
    %cst_55 = arith.constant dense<0.000000e+00> : vector<8x1xf32>
    %204 = tpu.matmul %202, %203, %cst_55 {dimension_numbers = #tpu.dot_dimension_numbers<[1], [0], [0], [1], [0, 0, 1, 1], [], []>} : vector<8x64xf32>, vector<64x1xf32>, vector<8x1xf32> -> vector<8x1xf32>
    %c0_56 = arith.constant 0 : index
    %c0_57 = arith.constant 0 : index
    %205 = vector.load %arg5[%c0_56, %c0_57] : memref<1x1xf32, #tpu.memory_space<vmem>>, vector<1x1xf32>
    %206 = vector.broadcast %205 : vector<1x1xf32> to vector<8x1xf32>
    %207 = arith.addf %204, %206 : vector<8x1xf32>
    %208 = arith.negf %207 : vector<8x1xf32>
    %209 = math.exp %208 : vector<8x1xf32>
    %cst_58 = arith.constant 1.000000e+00 : f32
    %210 = vector.broadcast %cst_58 : f32 to vector<8x1xf32>
    %211 = arith.addf %210, %209 : vector<8x1xf32>
    %212 = arith.divf %210, %211 : vector<8x1xf32>
    %c0_59 = arith.constant 0 : index
    %c0_60 = arith.constant 0 : index
    %213 = vector.load %arg6[%c0_59, %c0_60] : memref<8x1xf32, #tpu.memory_space<vmem>>, vector<8x1xf32>
    tpu.vector_store %arg6[%c0_59, %c0_60], %212 {strides = array<i32>} : memref<8x1xf32, #tpu.memory_space<vmem>>, vector<8x1xf32>,
    return
  }
}

</mosaic_0001>

<llo_original>
// kernel: tpu_custom_call.1
$region0: #{tpu_custom_call.1}
  #allocation0 [shape = 'u32[]', space=smem, size = 0x4, offset = 0x4, fixed_abs, tag = 'smem constant byte address 0x4 - core index']
  #allocation1 [shape = 'u32[144,128]{1,0:T(1,128)}', space=vmem, size = 0x12000, scoped, tag = 'internal scratch']
  #allocation2 [shape = 'f32[16,256]{1,0:T(8,128)}', space=vmem, size = 0x4000, scoped, tag = 'scratch operand']
  #allocation3 [shape = 'f32[8,64]{1,0:T(8,128)}', space=vmem, size = 0x1000, scoped, tag = 'scratch operand']
  #allocation4 [shape = 'f32[1,1]{1,0:T(1,128)S(1)}', space=vmem, size = 0x200, scoped, tag = 'scoped memory for tpu_custom_call.1']
  %s0 = inlined_call_operand.vmem [shape: bf16[16,4], index: 0, kind: input, shape index: {}]
  %s1 = inlined_call_operand.vmem [shape: bf16[4,256], index: 1, kind: input, shape index: {}]
  %s2 = inlined_call_operand.vmem [shape: bf16[64,256], index: 2, kind: input, shape index: {}]
  %s3 = inlined_call_operand.vmem [shape: f32[1,256], index: 3, kind: input, shape index: {}]
  %s4 = inlined_call_operand.vmem [shape: f32[64,1], index: 4, kind: input, shape index: {}]
  %s5 = inlined_call_operand.<no memory space> [shape: f32[1,1], index: 5, kind: input, shape index: {}]
  %s6 = inlined_call_operand.vmem [shape: f32[8,1], index: 6, kind: output, shape index: {}]
  %s7 = sld [smem:[#allocation0]]
  $region34: #{tpu_custom_call.1} parent=0
    _
  %s9 = ssub.s32 1, %s7
  %s10 = scalar_select 0, %s9, %s7
  %v11 = vstv %s5
  %12 = vst [vmem:[#allocation4] sm:$0x1] %v11
  // Predicated region
  $region2: #{tpu_custom_call.1} parent=0 // pred_check
    _
  $region3: #{tpu_custom_call.1} parent=0 // pred_check_branch
    %14 = sbr.rel (0) target = $region5
  $region4: #{tpu_custom_call.1} parent=0 // pred_region
    _
  $region5: #{tpu_custom_call.1} parent=0 // pred_fallthru
    _
  // Predicated region
  $region6: #{tpu_custom_call.1} parent=0 // pred_check
    _
  $region7: #{tpu_custom_call.1} parent=0 // pred_check_branch
    %16 = sbr.rel (0) target = $region9
  $region8: #{tpu_custom_call.1} parent=0 // pred_region
    _
  $region9: #{tpu_custom_call.1} parent=0 // pred_fallthru
    _
  // Predicated region
  $region10: #{tpu_custom_call.1} parent=0 // pred_check
    _
  $region11: #{tpu_custom_call.1} parent=0 // pred_check_branch
    %18 = sbr.rel (0) target = $region13
  $region12: #{tpu_custom_call.1} parent=0 // pred_region
    _
  $region13: #{tpu_custom_call.1} parent=0 // pred_fallthru
    _
  // Predicated region
  $region14: #{tpu_custom_call.1} parent=0 // pred_check
    _
  $region15: #{tpu_custom_call.1} parent=0 // pred_check_branch
    %20 = sbr.rel (0) target = $region17
  $region16: #{tpu_custom_call.1} parent=0 // pred_region
    _
  $region17: #{tpu_custom_call.1} parent=0 // pred_fallthru
    _
  // Predicated region
  $region18: #{tpu_custom_call.1} parent=0 // pred_check
    _
  $region19: #{tpu_custom_call.1} parent=0 // pred_check_branch
    %22 = sbr.rel (0) target = $region21
  $region20: #{tpu_custom_call.1} parent=0 // pred_region
    _
  $region21: #{tpu_custom_call.1} parent=0 // pred_fallthru
    _
  // Predicated region
  $region22: #{tpu_custom_call.1} parent=0 // pred_check
    _
  $region23: #{tpu_custom_call.1} parent=0 // pred_check_branch
    %24 = sbr.rel (0) target = $region25
  $region24: #{tpu_custom_call.1} parent=0 // pred_region
    _
  $region25: #{tpu_custom_call.1} parent=0 // pred_fallthru
    _
  %v26 = vld [vmem:[%s0] sm:$0xf]
  %v27 = vld [vmem:[%s0 + $0x4] sm:$0xf]
  %v28 = vld [vmem:[%s1] sm:$0xf]
  %v29 = vld [vmem:[%s3] sm:$0x3]
  %v31 = vlaneseq
  %v32 = vshrl.u32 %v31, 7
  %v33 = vsub.s32 0, %v32
  %v34 = vrot.slane %v29, %v33
  %v35 = vlaneseq
  %v36 = vshrl.u32 %v35, 7
  %v37 = vsub.s32 1, %v36
  %v38 = vrot.slane %v29, %v37
  %v43 = vunpack.c.l.b16 %v26
  %v44 = vunpack.c.l.b16 %v27
  %v45 = vpack.c.b16 %v44, %v43
  %v48 = vunpack.c.l.s4 1983009808
  %v49 = vunpack.c.0.s8 %v48
  %v50 = vlaneseq
  %v51 = vshrl.u32 %v50, 7
  %v52 = vsub.s32 %v49, %v51
  %v53 = vrot.slane %v28, %v52
  %v54 = vcombine.high %v53, %v53
  %vm55 = vcmask 31744
  %v57 = vsel %vm55, %v45, 0
  %vm59 = vcmask 1041408
  %v61 = vsel %vm59, %v53, 0
  %v64 = vsel %vm59, %v54, 0
  %66 = vmatprep.subr.bf16.mxu0 0
  %67 = vmatpush1.bf16.msra.mxu0 0
  %68 = vmatprep.subr.bf16.mxu0 0
  %69 = vmatpush1.bf16.msra.mxu0 0
  %70 = vmatprep.subr.bf16.mxu0 0
  %71 = vmatpush1.bf16.msra.mxu0 0
  %72 = vmatprep.subr.bf16.mxu0 0
  %73 = vmatpush1.bf16.msra.mxu0 0
  %74 = vmatprep.subr.bf16.mxu0 0
  %75 = vmatpush1.bf16.msra.mxu0 0
  %76 = vmatprep.subr.bf16.mxu0 0
  %77 = vmatpush1.bf16.msra.mxu0 0
  %78 = vmatprep.subr.bf16.mxu0 0
  %79 = vmatpush1.bf16.msra.mxu0 0
  %80 = vmatprep.subr.bf16.mxu0 %v64
  %81 = vmatpush1.bf16.msra.mxu0 %v61
  %82 = vmatprep.subr.bf16.mxu0 0
  %83 = vmatpush2.bf16.msra.mxu0 0
  %84 = vmatprep.subr.bf16.mxu0 0
  %85 = vmatpush2.bf16.msra.mxu0 0
  %86 = vmatprep.subr.bf16.mxu0 0
  %87 = vmatpush2.bf16.msra.mxu0 0
  %88 = vmatprep.subr.bf16.mxu0 0
  %89 = vmatpush2.bf16.msra.mxu0 0
  %90 = vmatprep.subr.bf16.mxu0 0
  %91 = vmatpush2.bf16.msra.mxu0 0
  %92 = vmatprep.subr.bf16.mxu0 0
  %93 = vmatpush2.bf16.msra.mxu0 0
  %94 = vmatprep.subr.bf16.mxu0 0
  %95 = vmatpush2.bf16.msra.mxu0 0
  %96 = vmatprep.subr.bf16.mxu0 0
  %97 = vmatpush2.bf16.msra.mxu0 0
  %98 = vmatprep.mubr.bf16.mxu0 0
  %99 = vmatmul.mubr.bf16.gmra.mxu0 %v57
  %v100 = vpop.f32.mrf.mxu0
  %v101 = vadd.f32 %v34, %v100
  %v102 = vpop.f32.mrf.mxu0
  %v103 = vadd.f32 %v38, %v102
  %v104 = vpop.f32.mrf.mxu0
  %v105 = vadd.f32 %v34, %v104
  %v106 = vpop.f32.mrf.mxu0
  %v107 = vadd.f32 %v38, %v106
  %108 = vdwg.mxu0
  %109 = vst [vmem:[#allocation2] sm:$0xff] %v101
  %110 = vst [vmem:[#allocation2 + $0x8] sm:$0xff] %v103
  %111 = vst [vmem:[#allocation2 + $0x10] sm:$0xff] %v105
  %112 = vst [vmem:[#allocation2 + $0x18] sm:$0xff] %v107
  %v113 = vld [vmem:[%s2] sm:$0xff]
  %v114 = vld [vmem:[%s2 + $0x8] sm:$0xff]
  %v115 = vld [vmem:[%s2 + $0x10] sm:$0xff]
  %v116 = vld [vmem:[%s2 + $0x18] sm:$0xff]
  %v117 = vld [vmem:[%s2 + $0x20] sm:$0xff]
  %v118 = vld [vmem:[%s2 + $0x28] sm:$0xff]
  %v119 = vld [vmem:[%s2 + $0x30] sm:$0xff]
  %v120 = vld [vmem:[%s2 + $0x38] sm:$0xff]
  %v121 = vld [vmem:[#allocation2] sm:$0x3]
  %v122 = vld [vmem:[#allocation2 + $0x8] sm:$0x3]
  %v131 = vunpack.c.l.b16 %v113
  %v132 = vunpack.c.h.b16 %v113
  %v133 = vunpack.c.l.b16 %v114
  %v134 = vunpack.c.h.b16 %v114
  %v135 = vunpack.c.l.b16 %v115
  %v136 = vunpack.c.h.b16 %v115
  %v137 = vunpack.c.l.b16 %v116
  %v138 = vunpack.c.h.b16 %v116
  %v139 = vunpack.c.l.b16 %v117
  %v140 = vunpack.c.h.b16 %v117
  %v141 = vunpack.c.l.b16 %v118
  %v142 = vunpack.c.h.b16 %v118
  %v143 = vunpack.c.l.b16 %v119
  %v144 = vunpack.c.h.b16 %v119
  %v145 = vunpack.c.l.b16 %v120
  %v146 = vunpack.c.h.b16 %v120
  %v147 = vpack.c.b16 %v133, %v131
  %v148 = vpack.c.b16 %v134, %v132
  %v149 = vpack.c.b16 %v137, %v135
  %v150 = vpack.c.b16 %v138, %v136
  %v151 = vpack.c.b16 %v141, %v139
  %v152 = vpack.c.b16 %v142, %v140
  %v153 = vpack.c.b16 %v145, %v143
  %v154 = vpack.c.b16 %v146, %v144
  %vm163 = vcmask 523264
  %v165 = vsel %vm163, 0, 0
  %167 = vmatprep.subr.bf16.mxu0 0
  %168 = vmatpush1.bf16.msra.mxu0 0
  %169 = vmatprep.subr.bf16.mxu0 0
  %170 = vmatpush1.bf16.msra.mxu0 0
  %171 = vmatprep.subr.bf16.mxu0 0
  %172 = vmatpush1.bf16.msra.mxu0 0
  %173 = vmatprep.subr.bf16.mxu0 0
  %174 = vmatpush1.bf16.msra.mxu0 0
  %175 = vmatprep.subr.bf16.mxu0 %v154
  %176 = vmatpush1.bf16.msra.mxu0 %v153
  %177 = vmatprep.subr.bf16.mxu0 %v152
  %178 = vmatpush1.bf16.msra.mxu0 %v151
  %179 = vmatprep.subr.bf16.mxu0 %v150
  %180 = vmatpush1.bf16.msra.mxu0 %v149
  %181 = vmatprep.subr.bf16.mxu0 %v148
  %182 = vmatpush1.bf16.msra.mxu0 %v147
  %183 = vmatprep.subr.bf16.mxu0 0
  %184 = vmatpush2.bf16.msra.mxu0 0
  %185 = vmatprep.subr.bf16.mxu0 0
  %186 = vmatpush2.bf16.msra.mxu0 0
  %187 = vmatprep.subr.bf16.mxu0 0
  %188 = vmatpush2.bf16.msra.mxu0 0
  %189 = vmatprep.subr.bf16.mxu0 0
  %190 = vmatpush2.bf16.msra.mxu0 0
  %191 = vmatprep.subr.bf16.mxu0 0
  %192 = vmatpush2.bf16.msra.mxu0 0
  %193 = vmatprep.subr.bf16.mxu0 0
  %194 = vmatpush2.bf16.msra.mxu0 0
  %195 = vmatprep.subr.bf16.mxu0 0
  %196 = vmatpush2.bf16.msra.mxu0 0
  %197 = vmatprep.subr.bf16.mxu0 0
  %198 = vmatpush2.bf16.msra.mxu0 0
  %199 = vmatprep.mubr.bf16.mxu0 0
  %200 = vmatmul.mubr.bf16.gmra.mxu0 %v165
  %v201 = vpop.f32.mrf.mxu0
  %v202 = vadd.f32 0.0, %v201
  %v203 = vpop.f32.mrf.mxu0
  %v204 = vadd.f32 0.0, %v203
  %v205 = vpop.f32.mrf.mxu0
  %v206 = vpop.f32.mrf.mxu0
  %207 = vdwg.mxu0
  %v208 = vadd.f32 %v121, %v202
  %v209 = vadd.f32 %v122, %v204
  %v210 = vxor.u32 %v208, 2147483648
  %v211 = vxor.u32 %v209, 2147483648
  %v212 = vmul.f32 %v210, 1.442695
  %v213 = vpow.pop %v212
  %v214 = vmul.f32 %v211, 1.442695
  %v215 = vpow.pop %v214
  %v216 = vadd.f32 %v213, 1.0
  %v217 = vadd.f32 %v215, 1.0
  %v218 = vrcp.pop %v216
  %v219 = vmul.f32 1.0, %v218
  %v220 = vrcp.pop %v217
  %v221 = vmul.f32 1.0, %v220
  %v222 = vtanh.pop %v209
  %v223 = vmul.f32 %v219, 0.0
  %v224 = vmul.f32 %v219, %v222
  %226 = vrot.lane.b32.xlu0 %v224, 64
  %v227 = vpop.permute.xlu0 %226
  %v229 = vadd.f32 %v223, %v227
  %v230 = vtanh.pop %v229
  %v231 = vmul.f32 %v221, %v230
  %233 = vrot.lane.b32.xlu0 %v231, 64
  %v234 = vpop.permute.xlu0 %233
  %vm236 = vcmask 517121
  %237 = vst.msk [vmem:[#allocation3 - $0x1] sm:$0x2] %vm236, %v234
  %v238 = vld [vmem:[#allocation2] sm:$0xc]
  %v239 = vld [vmem:[#allocation2 + $0x8] sm:$0xc]
  %v240 = vpack.c.bf16 %v231, %v231
  %242 = vrot.lane.b32.xlu0 %v240, 64
  %v243 = vpop.permute.xlu0 %242
  %v245 = vsel %vm163, %v243, 0
  %247 = vmatprep.subr.bf16.mxu0 0
  %248 = vmatpush1.bf16.msra.mxu0 0
  %249 = vmatprep.subr.bf16.mxu0 0
  %250 = vmatpush1.bf16.msra.mxu0 0
  %251 = vmatprep.subr.bf16.mxu0 0
  %252 = vmatpush1.bf16.msra.mxu0 0
  %253 = vmatprep.subr.bf16.mxu0 0
  %254 = vmatpush1.bf16.msra.mxu0 0
  %255 = vmatprep.subr.bf16.mxu0 %v154
  %256 = vmatpush1.bf16.msra.mxu0 %v153
  %257 = vmatprep.subr.bf16.mxu0 %v152
  %258 = vmatpush1.bf16.msra.mxu0 %v151
  %259 = vmatprep.subr.bf16.mxu0 %v150
  %260 = vmatpush1.bf16.msra.mxu0 %v149
  %261 = vmatprep.subr.bf16.mxu0 %v148
  %262 = vmatpush1.bf16.msra.mxu0 %v147
  %263 = vmatprep.subr.bf16.mxu0 0
  %264 = vmatpush2.bf16.msra.mxu0 0
  %265 = vmatprep.subr.bf16.mxu0 0
  %266 = vmatpush2.bf16.msra.mxu0 0
  %267 = vmatprep.subr.bf16.mxu0 0
  %268 = vmatpush2.bf16.msra.mxu0 0
  %269 = vmatprep.subr.bf16.mxu0 0
  %270 = vmatpush2.bf16.msra.mxu0 0
  %271 = vmatprep.subr.bf16.mxu0 0
  %272 = vmatpush2.bf16.msra.mxu0 0
  %273 = vmatprep.subr.bf16.mxu0 0
  %274 = vmatpush2.bf16.msra.mxu0 0
  %275 = vmatprep.subr.bf16.mxu0 0
  %276 = vmatpush2.bf16.msra.mxu0 0
  %277 = vmatprep.subr.bf16.mxu0 0
  %278 = vmatpush2.bf16.msra.mxu0 0
  %279 = vmatprep.mubr.bf16.mxu0 0
  %280 = vmatmul.mubr.bf16.gmra.mxu0 %v245
  %v281 = vpop.f32.mrf.mxu0
  %v282 = vadd.f32 0.0, %v281
  %v283 = vpop.f32.mrf.mxu0
  %v284 = vadd.f32 0.0, %v283
  %v285 = vpop.f32.mrf.mxu0
  %v286 = vpop.f32.mrf.mxu0
  %287 = vdwg.mxu0
  %v290 = vrot.slane %v282, 6
  %v291 = vrot.slane %v284, 6
  %v294 = vadd.f32 %v238, %v290
  %v295 = vadd.f32 %v239, %v291
  %v296 = vxor.u32 %v294, 2147483648
  %v297 = vxor.u32 %v295, 2147483648
  %v298 = vmul.f32 %v296, 1.442695
  %v299 = vpow.pop %v298
  %v300 = vmul.f32 %v297, 1.442695
  %v301 = vpow.pop %v300
  %v302 = vadd.f32 %v299, 1.0
  %v303 = vadd.f32 %v301, 1.0
  %v304 = vrcp.pop %v302
  %v305 = vmul.f32 1.0, %v304
  %v306 = vrcp.pop %v303
  %v307 = vmul.f32 1.0, %v306
  %v308 = vtanh.pop %v295
  %v310 = vrot.slane %v229, 6
  %v312 = vmul.f32 %v305, %v310
  %v313 = vmul.f32 %v305, %v308
  %315 = vrot.lane.b32.xlu0 %v313, 64
  %v316 = vpop.permute.xlu0 %315
  %v318 = vadd.f32 %v312, %v316
  %v319 = vtanh.pop %v318
  %v320 = vmul.f32 %v307, %v319
  %322 = vrot.lane.b32.xlu0 %v320, 64
  %v323 = vpop.permute.xlu0 %322
  %vm325 = vcmask 519171
  %326 = vst.msk [vmem:[#allocation3 - $0x2] sm:$0x8] %vm325, %v323
  %v327 = vld [vmem:[#allocation2] sm:$0x30]
  %v328 = vld [vmem:[#allocation2 + $0x8] sm:$0x30]
  %v329 = vpack.c.bf16 %v320, %v320
  %v331 = vrot.slane %v329, 1
  %332 = vrot.lane.b32.xlu0 %v331, 64
  %v333 = vpop.permute.xlu0 %332
  %v335 = vsel %vm163, %v333, 0
  %337 = vmatprep.subr.bf16.mxu0 0
  %338 = vmatpush1.bf16.msra.mxu0 0
  %339 = vmatprep.subr.bf16.mxu0 0
  %340 = vmatpush1.bf16.msra.mxu0 0
  %341 = vmatprep.subr.bf16.mxu0 0
  %342 = vmatpush1.bf16.msra.mxu0 0
  %343 = vmatprep.subr.bf16.mxu0 0
  %344 = vmatpush1.bf16.msra.mxu0 0
  %345 = vmatprep.subr.bf16.mxu0 %v154
  %346 = vmatpush1.bf16.msra.mxu0 %v153
  %347 = vmatprep.subr.bf16.mxu0 %v152
  %348 = vmatpush1.bf16.msra.mxu0 %v151
  %349 = vmatprep.subr.bf16.mxu0 %v150
  %350 = vmatpush1.bf16.msra.mxu0 %v149
  %351 = vmatprep.subr.bf16.mxu0 %v148
  %352 = vmatpush1.bf16.msra.mxu0 %v147
  %353 = vmatprep.subr.bf16.mxu0 0
  %354 = vmatpush2.bf16.msra.mxu0 0
  %355 = vmatprep.subr.bf16.mxu0 0
  %356 = vmatpush2.bf16.msra.mxu0 0
  %357 = vmatprep.subr.bf16.mxu0 0
  %358 = vmatpush2.bf16.msra.mxu0 0
  %359 = vmatprep.subr.bf16.mxu0 0
  %360 = vmatpush2.bf16.msra.mxu0 0
  %361 = vmatprep.subr.bf16.mxu0 0
  %362 = vmatpush2.bf16.msra.mxu0 0
  %363 = vmatprep.subr.bf16.mxu0 0
  %364 = vmatpush2.bf16.msra.mxu0 0
  %365 = vmatprep.subr.bf16.mxu0 0
  %366 = vmatpush2.bf16.msra.mxu0 0
  %367 = vmatprep.subr.bf16.mxu0 0
  %368 = vmatpush2.bf16.msra.mxu0 0
  %369 = vmatprep.mubr.bf16.mxu0 0
  %370 = vmatmul.mubr.bf16.gmra.mxu0 %v335
  %v371 = vpop.f32.mrf.mxu0
  %v372 = vadd.f32 0.0, %v371
  %v373 = vpop.f32.mrf.mxu0
  %v374 = vadd.f32 0.0, %v373
  %v375 = vpop.f32.mrf.mxu0
  %v376 = vpop.f32.mrf.mxu0
  %377 = vdwg.mxu0
  %v380 = vrot.slane %v372, 4
  %v381 = vrot.slane %v374, 4
  %v384 = vadd.f32 %v327, %v380
  %v385 = vadd.f32 %v328, %v381
  %v386 = vxor.u32 %v384, 2147483648
  %v387 = vxor.u32 %v385, 2147483648
  %v388 = vmul.f32 %v386, 1.442695
  %v389 = vpow.pop %v388
  %v390 = vmul.f32 %v387, 1.442695
  %v391 = vpow.pop %v390
  %v392 = vadd.f32 %v389, 1.0
  %v393 = vadd.f32 %v391, 1.0
  %v394 = vrcp.pop %v392
  %v395 = vmul.f32 1.0, %v394
  %v396 = vrcp.pop %v393
  %v397 = vmul.f32 1.0, %v396
  %v398 = vtanh.pop %v385
  %v400 = vrot.slane %v318, 6
  %v402 = vmul.f32 %v395, %v400
  %v403 = vmul.f32 %v395, %v398
  %405 = vrot.lane.b32.xlu0 %v403, 64
  %v406 = vpop.permute.xlu0 %405
  %v408 = vadd.f32 %v402, %v406
  %v409 = vtanh.pop %v408
  %v410 = vmul.f32 %v397, %v409
  %412 = vrot.lane.b32.xlu0 %v410, 64
  %v413 = vpop.permute.xlu0 %412
  %vm415 = vcmask 521221
  %416 = vst.msk [vmem:[#allocation3 - $0x3] sm:$0x20] %vm415, %v413
  %v417 = vld [vmem:[#allocation2] sm:$0xc0]
  %v418 = vld [vmem:[#allocation2 + $0x8] sm:$0xc0]
  %v419 = vpack.c.bf16 %v410, %v410
  %v421 = vrot.slane %v419, 2
  %422 = vrot.lane.b32.xlu0 %v421, 64
  %v423 = vpop.permute.xlu0 %422
  %v425 = vsel %vm163, %v423, 0
  %427 = vmatprep.subr.bf16.mxu0 0
  %428 = vmatpush1.bf16.msra.mxu0 0
  %429 = vmatprep.subr.bf16.mxu0 0
  %430 = vmatpush1.bf16.msra.mxu0 0
  %431 = vmatprep.subr.bf16.mxu0 0
  %432 = vmatpush1.bf16.msra.mxu0 0
  %433 = vmatprep.subr.bf16.mxu0 0
  %434 = vmatpush1.bf16.msra.mxu0 0
  %435 = vmatprep.subr.bf16.mxu0 %v154
  %436 = vmatpush1.bf16.msra.mxu0 %v153
  %437 = vmatprep.subr.bf16.mxu0 %v152
  %438 = vmatpush1.bf16.msra.mxu0 %v151
  %439 = vmatprep.subr.bf16.mxu0 %v150
  %440 = vmatpush1.bf16.msra.mxu0 %v149
  %441 = vmatprep.subr.bf16.mxu0 %v148
  %442 = vmatpush1.bf16.msra.mxu0 %v147
  %443 = vmatprep.subr.bf16.mxu0 0
  %444 = vmatpush2.bf16.msra.mxu0 0
  %445 = vmatprep.subr.bf16.mxu0 0
  %446 = vmatpush2.bf16.msra.mxu0 0
  %447 = vmatprep.subr.bf16.mxu0 0
  %448 = vmatpush2.bf16.msra.mxu0 0
  %449 = vmatprep.subr.bf16.mxu0 0
  %450 = vmatpush2.bf16.msra.mxu0 0
  %451 = vmatprep.subr.bf16.mxu0 0
  %452 = vmatpush2.bf16.msra.mxu0 0
  %453 = vmatprep.subr.bf16.mxu0 0
  %454 = vmatpush2.bf16.msra.mxu0 0
  %455 = vmatprep.subr.bf16.mxu0 0
  %456 = vmatpush2.bf16.msra.mxu0 0
  %457 = vmatprep.subr.bf16.mxu0 0
  %458 = vmatpush2.bf16.msra.mxu0 0
  %459 = vmatprep.mubr.bf16.mxu0 0
  %460 = vmatmul.mubr.bf16.gmra.mxu0 %v425
  %v461 = vpop.f32.mrf.mxu0
  %v462 = vadd.f32 0.0, %v461
  %v463 = vpop.f32.mrf.mxu0
  %v464 = vadd.f32 0.0, %v463
  %v465 = vpop.f32.mrf.mxu0
  %v466 = vpop.f32.mrf.mxu0
  %467 = vdwg.mxu0
  %v470 = vrot.slane %v462, 2
  %v471 = vrot.slane %v464, 2
  %v474 = vadd.f32 %v417, %v470
  %v475 = vadd.f32 %v418, %v471
  %v476 = vxor.u32 %v474, 2147483648
  %v477 = vxor.u32 %v475, 2147483648
  %v478 = vmul.f32 %v476, 1.442695
  %v479 = vpow.pop %v478
  %v480 = vmul.f32 %v477, 1.442695
  %v481 = vpow.pop %v480
  %v482 = vadd.f32 %v479, 1.0
  %v483 = vadd.f32 %v481, 1.0
  %v484 = vrcp.pop %v482
  %v485 = vmul.f32 1.0, %v484
  %v486 = vrcp.pop %v483
  %v487 = vmul.f32 1.0, %v486
  %v488 = vtanh.pop %v475
  %v490 = vrot.slane %v408, 6
  %v492 = vmul.f32 %v485, %v490
  %v493 = vmul.f32 %v485, %v488
  %495 = vrot.lane.b32.xlu0 %v493, 64
  %v496 = vpop.permute.xlu0 %495
  %v498 = vadd.f32 %v492, %v496
  %v499 = vtanh.pop %v498
  %v500 = vmul.f32 %v487, %v499
  %502 = vrot.lane.b32.xlu0 %v500, 64
  %v503 = vpop.permute.xlu0 %502
  %vm505 = vcmask 523271
  %506 = vst.msk [vmem:[#allocation3 - $0x4] sm:$0x80] %vm505, %v503
  %v507 = vld [vmem:[#allocation2 + $0x10] sm:$0x3]
  %v508 = vld [vmem:[#allocation2 + $0x18] sm:$0x3]
  %v509 = vpack.c.bf16 %v500, %v500
  %v511 = vrot.slane %v509, 3
  %512 = vrot.lane.b32.xlu0 %v511, 64
  %v513 = vpop.permute.xlu0 %512
  %v515 = vsel %vm163, %v513, 0
  %517 = vmatprep.subr.bf16.mxu0 0
  %518 = vmatpush1.bf16.msra.mxu0 0
  %519 = vmatprep.subr.bf16.mxu0 0
  %520 = vmatpush1.bf16.msra.mxu0 0
  %521 = vmatprep.subr.bf16.mxu0 0
  %522 = vmatpush1.bf16.msra.mxu0 0
  %523 = vmatprep.subr.bf16.mxu0 0
  %524 = vmatpush1.bf16.msra.mxu0 0
  %525 = vmatprep.subr.bf16.mxu0 %v154
  %526 = vmatpush1.bf16.msra.mxu0 %v153
  %527 = vmatprep.subr.bf16.mxu0 %v152
  %528 = vmatpush1.bf16.msra.mxu0 %v151
  %529 = vmatprep.subr.bf16.mxu0 %v150
  %530 = vmatpush1.bf16.msra.mxu0 %v149
  %531 = vmatprep.subr.bf16.mxu0 %v148
  %532 = vmatpush1.bf16.msra.mxu0 %v147
  %533 = vmatprep.subr.bf16.mxu0 0
  %534 = vmatpush2.bf16.msra.mxu0 0
  %535 = vmatprep.subr.bf16.mxu0 0
  %536 = vmatpush2.bf16.msra.mxu0 0
  %537 = vmatprep.subr.bf16.mxu0 0
  %538 = vmatpush2.bf16.msra.mxu0 0
  %539 = vmatprep.subr.bf16.mxu0 0
  %540 = vmatpush2.bf16.msra.mxu0 0
  %541 = vmatprep.subr.bf16.mxu0 0
  %542 = vmatpush2.bf16.msra.mxu0 0
  %543 = vmatprep.subr.bf16.mxu0 0
  %544 = vmatpush2.bf16.msra.mxu0 0
  %545 = vmatprep.subr.bf16.mxu0 0
  %546 = vmatpush2.bf16.msra.mxu0 0
  %547 = vmatprep.subr.bf16.mxu0 0
  %548 = vmatpush2.bf16.msra.mxu0 0
  %549 = vmatprep.mubr.bf16.mxu0 0
  %550 = vmatmul.mubr.bf16.gmra.mxu0 %v515
  %v551 = vpop.f32.mrf.mxu0
  %v552 = vadd.f32 0.0, %v551
  %v553 = vpop.f32.mrf.mxu0
  %v554 = vadd.f32 0.0, %v553
  %v555 = vpop.f32.mrf.mxu0
  %v556 = vpop.f32.mrf.mxu0
  %557 = vdwg.mxu0
  %v558 = vadd.f32 %v507, %v552
  %v559 = vadd.f32 %v508, %v554
  %v560 = vxor.u32 %v558, 2147483648
  %v561 = vxor.u32 %v559, 2147483648
  %v562 = vmul.f32 %v560, 1.442695
  %v563 = vpow.pop %v562
  %v564 = vmul.f32 %v561, 1.442695
  %v565 = vpow.pop %v564
  %v566 = vadd.f32 %v563, 1.0
  %v567 = vadd.f32 %v565, 1.0
  %v568 = vrcp.pop %v566
  %v569 = vmul.f32 1.0, %v568
  %v570 = vrcp.pop %v567
  %v571 = vmul.f32 1.0, %v570
  %v572 = vtanh.pop %v559
  %v574 = vrot.slane %v498, 6
  %v576 = vmul.f32 %v569, %v574
  %v577 = vmul.f32 %v569, %v572
  %579 = vrot.lane.b32.xlu0 %v577, 64
  %v580 = vpop.permute.xlu0 %579
  %v582 = vadd.f32 %v576, %v580
  %v583 = vtanh.pop %v582
  %v584 = vmul.f32 %v571, %v583
  %586 = vrot.lane.b32.xlu0 %v584, 64
  %v587 = vpop.permute.xlu0 %586
  %589 = vst.msk [vmem:[#allocation3 + $0x3] sm:$0x2] %vm236, %v587
  %v590 = vld [vmem:[#allocation2 + $0x10] sm:$0xc]
  %v591 = vld [vmem:[#allocation2 + $0x18] sm:$0xc]
  %v592 = vpack.c.bf16 %v584, %v584
  %594 = vrot.lane.b32.xlu0 %v592, 64
  %v595 = vpop.permute.xlu0 %594
  %v597 = vsel %vm163, %v595, 0
  %599 = vmatprep.subr.bf16.mxu0 0
  %600 = vmatpush1.bf16.msra.mxu0 0
  %601 = vmatprep.subr.bf16.mxu0 0
  %602 = vmatpush1.bf16.msra.mxu0 0
  %603 = vmatprep.subr.bf16.mxu0 0
  %604 = vmatpush1.bf16.msra.mxu0 0
  %605 = vmatprep.subr.bf16.mxu0 0
  %606 = vmatpush1.bf16.msra.mxu0 0
  %607 = vmatprep.subr.bf16.mxu0 %v154
  %608 = vmatpush1.bf16.msra.mxu0 %v153
  %609 = vmatprep.subr.bf16.mxu0 %v152
  %610 = vmatpush1.bf16.msra.mxu0 %v151
  %611 = vmatprep.subr.bf16.mxu0 %v150
  %612 = vmatpush1.bf16.msra.mxu0 %v149
  %613 = vmatprep.subr.bf16.mxu0 %v148
  %614 = vmatpush1.bf16.msra.mxu0 %v147
  %615 = vmatprep.subr.bf16.mxu0 0
  %616 = vmatpush2.bf16.msra.mxu0 0
  %617 = vmatprep.subr.bf16.mxu0 0
  %618 = vmatpush2.bf16.msra.mxu0 0
  %619 = vmatprep.subr.bf16.mxu0 0
  %620 = vmatpush2.bf16.msra.mxu0 0
  %621 = vmatprep.subr.bf16.mxu0 0
  %622 = vmatpush2.bf16.msra.mxu0 0
  %623 = vmatprep.subr.bf16.mxu0 0
  %624 = vmatpush2.bf16.msra.mxu0 0
  %625 = vmatprep.subr.bf16.mxu0 0
  %626 = vmatpush2.bf16.msra.mxu0 0
  %627 = vmatprep.subr.bf16.mxu0 0
  %628 = vmatpush2.bf16.msra.mxu0 0
  %629 = vmatprep.subr.bf16.mxu0 0
  %630 = vmatpush2.bf16.msra.mxu0 0
  %631 = vmatprep.mubr.bf16.mxu0 0
  %632 = vmatmul.mubr.bf16.gmra.mxu0 %v597
  %v633 = vpop.f32.mrf.mxu0
  %v634 = vadd.f32 0.0, %v633
  %v635 = vpop.f32.mrf.mxu0
  %v636 = vadd.f32 0.0, %v635
  %v637 = vpop.f32.mrf.mxu0
  %v638 = vpop.f32.mrf.mxu0
  %639 = vdwg.mxu0
  %v642 = vrot.slane %v634, 6
  %v643 = vrot.slane %v636, 6
  %v646 = vadd.f32 %v590, %v642
  %v647 = vadd.f32 %v591, %v643
  %v648 = vxor.u32 %v646, 2147483648
  %v649 = vxor.u32 %v647, 2147483648
  %v650 = vmul.f32 %v648, 1.442695
  %v651 = vpow.pop %v650
  %v652 = vmul.f32 %v649, 1.442695
  %v653 = vpow.pop %v652
  %v654 = vadd.f32 %v651, 1.0
  %v655 = vadd.f32 %v653, 1.0
  %v656 = vrcp.pop %v654
  %v657 = vmul.f32 1.0, %v656
  %v658 = vrcp.pop %v655
  %v659 = vmul.f32 1.0, %v658
  %v660 = vtanh.pop %v647
  %v662 = vrot.slane %v582, 6
  %v664 = vmul.f32 %v657, %v662
  %v665 = vmul.f32 %v657, %v660
  %667 = vrot.lane.b32.xlu0 %v665, 64
  %v668 = vpop.permute.xlu0 %667
  %v670 = vadd.f32 %v664, %v668
  %v671 = vtanh.pop %v670
  %v672 = vmul.f32 %v659, %v671
  %674 = vrot.lane.b32.xlu0 %v672, 64
  %v675 = vpop.permute.xlu0 %674
  %677 = vst.msk [vmem:[#allocation3 + $0x2] sm:$0x8] %vm325, %v675
  %v678 = vld [vmem:[#allocation2 + $0x10] sm:$0x30]
  %v679 = vld [vmem:[#allocation2 + $0x18] sm:$0x30]
  %v680 = vpack.c.bf16 %v672, %v672
  %v682 = vrot.slane %v680, 1
  %683 = vrot.lane.b32.xlu0 %v682, 64
  %v684 = vpop.permute.xlu0 %683
  %v686 = vsel %vm163, %v684, 0
  %688 = vmatprep.subr.bf16.mxu0 0
  %689 = vmatpush1.bf16.msra.mxu0 0
  %690 = vmatprep.subr.bf16.mxu0 0
  %691 = vmatpush1.bf16.msra.mxu0 0
  %692 = vmatprep.subr.bf16.mxu0 0
  %693 = vmatpush1.bf16.msra.mxu0 0
  %694 = vmatprep.subr.bf16.mxu0 0
  %695 = vmatpush1.bf16.msra.mxu0 0
  %696 = vmatprep.subr.bf16.mxu0 %v154
  %697 = vmatpush1.bf16.msra.mxu0 %v153
  %698 = vmatprep.subr.bf16.mxu0 %v152
  %699 = vmatpush1.bf16.msra.mxu0 %v151
  %700 = vmatprep.subr.bf16.mxu0 %v150
  %701 = vmatpush1.bf16.msra.mxu0 %v149
  %702 = vmatprep.subr.bf16.mxu0 %v148
  %703 = vmatpush1.bf16.msra.mxu0 %v147
  %704 = vmatprep.subr.bf16.mxu0 0
  %705 = vmatpush2.bf16.msra.mxu0 0
  %706 = vmatprep.subr.bf16.mxu0 0
  %707 = vmatpush2.bf16.msra.mxu0 0
  %708 = vmatprep.subr.bf16.mxu0 0
  %709 = vmatpush2.bf16.msra.mxu0 0
  %710 = vmatprep.subr.bf16.mxu0 0
  %711 = vmatpush2.bf16.msra.mxu0 0
  %712 = vmatprep.subr.bf16.mxu0 0
  %713 = vmatpush2.bf16.msra.mxu0 0
  %714 = vmatprep.subr.bf16.mxu0 0
  %715 = vmatpush2.bf16.msra.mxu0 0
  %716 = vmatprep.subr.bf16.mxu0 0
  %717 = vmatpush2.bf16.msra.mxu0 0
  %718 = vmatprep.subr.bf16.mxu0 0
  %719 = vmatpush2.bf16.msra.mxu0 0
  %720 = vmatprep.mubr.bf16.mxu0 0
  %721 = vmatmul.mubr.bf16.gmra.mxu0 %v686
  %v722 = vpop.f32.mrf.mxu0
  %v723 = vadd.f32 0.0, %v722
  %v724 = vpop.f32.mrf.mxu0
  %v725 = vadd.f32 0.0, %v724
  %v726 = vpop.f32.mrf.mxu0
  %v727 = vpop.f32.mrf.mxu0
  %728 = vdwg.mxu0
  %v731 = vrot.slane %v723, 4
  %v732 = vrot.slane %v725, 4
  %v735 = vadd.f32 %v678, %v731
  %v736 = vadd.f32 %v679, %v732
  %v737 = vxor.u32 %v735, 2147483648
  %v738 = vxor.u32 %v736, 2147483648
  %v739 = vmul.f32 %v737, 1.442695
  %v740 = vpow.pop %v739
  %v741 = vmul.f32 %v738, 1.442695
  %v742 = vpow.pop %v741
  %v743 = vadd.f32 %v740, 1.0
  %v744 = vadd.f32 %v742, 1.0
  %v745 = vrcp.pop %v743
  %v746 = vmul.f32 1.0, %v745
  %v747 = vrcp.pop %v744
  %v748 = vmul.f32 1.0, %v747
  %v749 = vtanh.pop %v736
  %v751 = vrot.slane %v670, 6
  %v753 = vmul.f32 %v746, %v751
  %v754 = vmul.f32 %v746, %v749
  %756 = vrot.lane.b32.xlu0 %v754, 64
  %v757 = vpop.permute.xlu0 %756
  %v759 = vadd.f32 %v753, %v757
  %v760 = vtanh.pop %v759
  %v761 = vmul.f32 %v748, %v760
  %763 = vrot.lane.b32.xlu0 %v761, 64
  %v764 = vpop.permute.xlu0 %763
  %766 = vst.msk [vmem:[#allocation3 + $0x1] sm:$0x20] %vm415, %v764
  %v767 = vld [vmem:[#allocation2 + $0x10] sm:$0xc0]
  %v768 = vld [vmem:[#allocation2 + $0x18] sm:$0xc0]
  %v769 = vpack.c.bf16 %v761, %v761
  %v771 = vrot.slane %v769, 2
  %772 = vrot.lane.b32.xlu0 %v771, 64
  %v773 = vpop.permute.xlu0 %772
  %v775 = vsel %vm163, %v773, 0
  %777 = vmatprep.subr.bf16.mxu0 0
  %778 = vmatpush1.bf16.msra.mxu0 0
  %779 = vmatprep.subr.bf16.mxu0 0
  %780 = vmatpush1.bf16.msra.mxu0 0
  %781 = vmatprep.subr.bf16.mxu0 0
  %782 = vmatpush1.bf16.msra.mxu0 0
  %783 = vmatprep.subr.bf16.mxu0 0
  %784 = vmatpush1.bf16.msra.mxu0 0
  %785 = vmatprep.subr.bf16.mxu0 %v154
  %786 = vmatpush1.bf16.msra.mxu0 %v153
  %787 = vmatprep.subr.bf16.mxu0 %v152
  %788 = vmatpush1.bf16.msra.mxu0 %v151
  %789 = vmatprep.subr.bf16.mxu0 %v150
  %790 = vmatpush1.bf16.msra.mxu0 %v149
  %791 = vmatprep.subr.bf16.mxu0 %v148
  %792 = vmatpush1.bf16.msra.mxu0 %v147
  %793 = vmatprep.subr.bf16.mxu0 0
  %794 = vmatpush2.bf16.msra.mxu0 0
  %795 = vmatprep.subr.bf16.mxu0 0
  %796 = vmatpush2.bf16.msra.mxu0 0
  %797 = vmatprep.subr.bf16.mxu0 0
  %798 = vmatpush2.bf16.msra.mxu0 0
  %799 = vmatprep.subr.bf16.mxu0 0
  %800 = vmatpush2.bf16.msra.mxu0 0
  %801 = vmatprep.subr.bf16.mxu0 0
  %802 = vmatpush2.bf16.msra.mxu0 0
  %803 = vmatprep.subr.bf16.mxu0 0
  %804 = vmatpush2.bf16.msra.mxu0 0
  %805 = vmatprep.subr.bf16.mxu0 0
  %806 = vmatpush2.bf16.msra.mxu0 0
  %807 = vmatprep.subr.bf16.mxu0 0
  %808 = vmatpush2.bf16.msra.mxu0 0
  %809 = vmatprep.mubr.bf16.mxu0 0
  %810 = vmatmul.mubr.bf16.gmra.mxu0 %v775
  %v811 = vpop.f32.mrf.mxu0
  %v812 = vadd.f32 0.0, %v811
  %v813 = vpop.f32.mrf.mxu0
  %v814 = vadd.f32 0.0, %v813
  %v815 = vpop.f32.mrf.mxu0
  %v816 = vpop.f32.mrf.mxu0
  %817 = vdwg.mxu0
  %v820 = vrot.slane %v812, 2
  %v821 = vrot.slane %v814, 2
  %v824 = vadd.f32 %v767, %v820
  %v825 = vadd.f32 %v768, %v821
  %v826 = vxor.u32 %v824, 2147483648
  %v827 = vxor.u32 %v825, 2147483648
  %v828 = vmul.f32 %v826, 1.442695
  %v829 = vpow.pop %v828
  %v830 = vmul.f32 %v827, 1.442695
  %v831 = vpow.pop %v830
  %v832 = vadd.f32 %v829, 1.0
  %v833 = vadd.f32 %v831, 1.0
  %v834 = vrcp.pop %v832
  %v835 = vmul.f32 1.0, %v834
  %v836 = vrcp.pop %v833
  %v837 = vmul.f32 1.0, %v836
  %v838 = vtanh.pop %v825
  %v840 = vrot.slane %v759, 6
  %v842 = vmul.f32 %v835, %v840
  %v843 = vmul.f32 %v835, %v838
  %845 = vrot.lane.b32.xlu0 %v843, 64
  %v846 = vpop.permute.xlu0 %845
  %v848 = vadd.f32 %v842, %v846
  %v849 = vtanh.pop %v848
  %v850 = vmul.f32 %v837, %v849
  %852 = vrot.lane.b32.xlu0 %v850, 64
  %v853 = vpop.permute.xlu0 %852
  %855 = vst.msk [vmem:[#allocation3] sm:$0x80] %vm505, %v853
  %v856 = vld [vmem:[#allocation3] sm:$0xff]
  %v857 = vld [vmem:[%s4] sm:$0xff]
  %v858 = vld [vmem:[%s4 + $0x8] sm:$0xff]
  %v859 = vld [vmem:[%s4 + $0x10] sm:$0xff]
  %v860 = vld [vmem:[%s4 + $0x18] sm:$0xff]
  %v861 = vld [vmem:[%s4 + $0x20] sm:$0xff]
  %v862 = vld [vmem:[%s4 + $0x28] sm:$0xff]
  %v863 = vld [vmem:[%s4 + $0x30] sm:$0xff]
  %v864 = vld [vmem:[%s4 + $0x38] sm:$0xff]
  %v865 = vld [vmem:[#allocation4] sm:$0x1]
  %v867 = vlaneseq
  %v868 = vshrl.u32 %v867, 7
  %v869 = vsub.s32 0, %v868
  %v870 = vrot.slane %v865, %v869
  %v873 = vsel %vm163, %v856, 0
  %875 = vmatprep.subr.mxu0 0.0
  %876 = vmatpush1.msra.mxu0 0.0
  %877 = vmatprep.subr.mxu0 0.0
  %878 = vmatpush1.msra.mxu0 0.0
  %879 = vmatprep.subr.mxu0 0.0
  %880 = vmatpush1.msra.mxu0 0.0
  %881 = vmatprep.subr.mxu0 0.0
  %882 = vmatpush1.msra.mxu0 0.0
  %883 = vmatprep.subr.mxu0 0.0
  %884 = vmatpush1.msra.mxu0 0.0
  %885 = vmatprep.subr.mxu0 0.0
  %886 = vmatpush1.msra.mxu0 0.0
  %887 = vmatprep.subr.mxu0 0.0
  %888 = vmatpush1.msra.mxu0 0.0
  %889 = vmatprep.subr.mxu0 0.0
  %890 = vmatpush1.msra.mxu0 0.0
  %891 = vmatprep.subr.mxu0 0.0
  %892 = vmatpush1.msra.mxu0 %v864
  %893 = vmatprep.subr.mxu0 0.0
  %894 = vmatpush1.msra.mxu0 %v863
  %895 = vmatprep.subr.mxu0 0.0
  %896 = vmatpush1.msra.mxu0 %v862
  %897 = vmatprep.subr.mxu0 0.0
  %898 = vmatpush1.msra.mxu0 %v861
  %899 = vmatprep.subr.mxu0 0.0
  %900 = vmatpush1.msra.mxu0 %v860
  %901 = vmatprep.subr.mxu0 0.0
  %902 = vmatpush1.msra.mxu0 %v859
  %903 = vmatprep.subr.mxu0 0.0
  %904 = vmatpush1.msra.mxu0 %v858
  %905 = vmatprep.subr.mxu0 0.0
  %906 = vmatpush1.msra.mxu0 %v857
  %907 = vmatprep.subr.mxu0 0.0
  %908 = vmatpush2.msra.mxu0 0.0
  %909 = vmatprep.subr.mxu0 0.0
  %910 = vmatpush2.msra.mxu0 0.0
  %911 = vmatprep.subr.mxu0 0.0
  %912 = vmatpush2.msra.mxu0 0.0
  %913 = vmatprep.subr.mxu0 0.0
  %914 = vmatpush2.msra.mxu0 0.0
  %915 = vmatprep.subr.mxu0 0.0
  %916 = vmatpush2.msra.mxu0 0.0
  %917 = vmatprep.subr.mxu0 0.0
  %918 = vmatpush2.msra.mxu0 0.0
  %919 = vmatprep.subr.mxu0 0.0
  %920 = vmatpush2.msra.mxu0 0.0
  %921 = vmatprep.subr.mxu0 0.0
  %922 = vmatpush2.msra.mxu0 0.0
  %923 = vmatprep.subr.mxu0 0.0
  %924 = vmatpush2.msra.mxu0 0.0
  %925 = vmatprep.subr.mxu0 0.0
  %926 = vmatpush2.msra.mxu0 0.0
  %927 = vmatprep.subr.mxu0 0.0
  %928 = vmatpush2.msra.mxu0 0.0
  %929 = vmatprep.subr.mxu0 0.0
  %930 = vmatpush2.msra.mxu0 0.0
  %931 = vmatprep.subr.mxu0 0.0
  %932 = vmatpush2.msra.mxu0 0.0
  %933 = vmatprep.subr.mxu0 0.0
  %934 = vmatpush2.msra.mxu0 0.0
  %935 = vmatprep.subr.mxu0 0.0
  %936 = vmatpush2.msra.mxu0 0.0
  %937 = vmatprep.subr.mxu0 0.0
  %938 = vmatpush2.msra.mxu0 0.0
  %939 = vmatprep.mubr.f32.mxu0 0.0
  %940 = vmatmul.mubr.f32.gmra.mxu0 %v873
  %v941 = vpop.f32.mrf.mxu0
  %v942 = vadd.f32 %v870, %v941
  %v943 = vpop.f32.mrf.mxu0
  %944 = vdwg.mxu0
  %v945 = vxor.u32 %v942, 2147483648
  %v946 = vmul.f32 %v945, 1.442695
  %v947 = vpow.pop %v946
  %v948 = vadd.f32 %v947, 1.0
  %v949 = vrcp.pop %v948
  %v950 = vmul.f32 1.0, %v949
  %vm951 = vcmask 7168
  %952 = vst.msk [vmem:[%s6] sm:$0xff] %vm951, %v950
  // Predicated region
  $region26: #{tpu_custom_call.1} parent=0 // pred_check
    _
  $region27: #{tpu_custom_call.1} parent=0 // pred_check_branch
    %954 = sbr.rel (0) target = $region29
  $region28: #{tpu_custom_call.1} parent=0 // pred_region
    _
  $region29: #{tpu_custom_call.1} parent=0 // pred_fallthru
    _
  // Predicated region
  $region30: #{tpu_custom_call.1} parent=0 // pred_check
    _
  $region31: #{tpu_custom_call.1} parent=0 // pred_check_branch
    %956 = sbr.rel (0) target = $region33
  $region32: #{tpu_custom_call.1} parent=0 // pred_region
    _
  $region33: #{tpu_custom_call.1} parent=0 // pred_fallthru
    _

</llo_original>
